<compile_context>
chip_gen: v5e
topology: v5e:2x2
jax: 0.10.0
libtpu: 0.0.40
codegen_flags: <defaults>
</compile_context>

<pallas_src>
import math
from functools import partial

import jax
import jax.numpy as jnp
from jax.experimental import pallas as pl
from jax.experimental.pallas import tpu as pltpu


def _round_up(x, m):
    return ((x + m - 1) // m) * m


# ----------------------------------------------------------------------------
# Kernel: y = x * (pos_scale if x >= 0 else neg_scale), elementwise.
# ----------------------------------------------------------------------------
def _trelu_kernel(x_ref, o_ref, *, pos_scale, neg_scale, compute_dtype):
    x = x_ref[...].astype(compute_dtype)          # no-op for f32 / bf16 inputs
    scale = jnp.where(x >= 0,
                      jnp.asarray(pos_scale, compute_dtype),
                      jnp.asarray(neg_scale, compute_dtype))
    o_ref[...] = (x * scale).astype(o_ref.dtype)  # single vmul per vreg


# ----------------------------------------------------------------------------
# Wrapper
# ----------------------------------------------------------------------------
def trelu_forward(x, neg_slope, *, block_m=1024):
    """TReLU forward: output_scale * leaky_relu(x, neg_slope). Any input shape."""
    output_scale = math.sqrt(2.0 / (1.0 + neg_slope ** 2))
    pos_scale = output_scale
    neg_scale = output_scale * neg_slope

    orig_shape = x.shape
    orig_dtype = x.dtype
    itemsize = jnp.dtype(orig_dtype).itemsize
    total = int(math.prod(orig_shape)) if orig_shape else 1

    # Native compute dtype: bf16 on bf16 inputs (v6e/v7x bf16 VPU), else f32.
    if orig_dtype in (jnp.dtype(jnp.float32), jnp.dtype(jnp.bfloat16)):
        compute_dtype = orig_dtype
    else:
        compute_dtype = jnp.float32

    # Sublane multiple for the packed (sub, 128) VMEM tile of this dtype.
    sub = {4: 8, 2: 16, 1: 32}.get(itemsize, 8)

    # ---- Lay out as a lane-dense (rows, bn) slab, avoiding padding. ----
    padded = False
    if total % 128 == 0:
        # Pick the widest lane block that exactly divides the element count:
        # unmasked full-lane stores and zero wrapper-side pad/slice copies.
        bn = next(c for c in (1024, 512, 256, 128) if total % c == 0)
        rows = total // bn
        x2 = x.reshape(rows, bn)
    else:
        # Rare fallback (element count not a multiple of 128): pad only the
        # lane remainder.  # TODO(synk): masked tail kernel to drop this copy.
        padded = True
        bn = 128
        padded_total = _round_up(total, 128)
        flat = jnp.pad(x.reshape(-1), (0, padded_total - total))
        rows = padded_total // bn
        x2 = flat.reshape(rows, bn)

    # ---- Row tiling: big tiles, but always >= 2 grid steps when there is
    # more than one sublane-tile of work (feeds both v7x TensorCores). ----
    if rows > sub:
        bm = min(_round_up(block_m, sub), _round_up(pl.cdiv(rows, 2), sub))
        grid_m = pl.cdiv(rows, bm)     # last block may overhang; Pallas masks it
    else:
        bm = rows                       # full-extent block (always legal)
        grid_m = 1

    grid = (grid_m,)

    # Scheduler hint: 2 bytes of HBM traffic per element-byte, ~2 flops/elem.
    cost = pl.CostEstimate(flops=2 * total, transcendentals=0,
                           bytes_accessed=2 * total * itemsize)

    out2 = pl.pallas_call(
        partial(_trelu_kernel, pos_scale=pos_scale, neg_scale=neg_scale,
                compute_dtype=compute_dtype),
        out_shape=jax.ShapeDtypeStruct((rows, bn), orig_dtype),
        grid_spec=pltpu.PrefetchScalarGridSpec(
            num_scalar_prefetch=0,
            grid=grid,
            in_specs=[pl.BlockSpec((bm, bn), lambda i: (i, 0))],
            out_specs=pl.BlockSpec((bm, bn), lambda i: (i, 0)),
        ),
        compiler_params=pltpu.CompilerParams(
            dimension_semantics=("parallel",),
            # 2 bufs x (in + out) x up-to-4MiB tiles = 16 MiB; 48 MiB gives
            # headroom past v5e's 16 MiB scoped default, < v7x's 64 MiB VMEM.
            vmem_limit_bytes=48 * 1024 * 1024,
        ),
        cost_estimate=cost,
    )(x2)

    if padded:
        return out2.reshape(-1)[:total].reshape(orig_shape)
    return out2.reshape(orig_shape)


# ----------------------------------------------------------------------------
# Demo / smoke test
# ----------------------------------------------------------------------------
if __name__ == "__main__":
    key = jax.random.PRNGKey(0)
    neg_slope = 0.1

    # Small input consistent with an elementwise activation module.
    x = jax.random.normal(key, (2, 4, 16, 16), dtype=jnp.float32)

    y = trelu_forward(x, neg_slope)
    y = jax.block_until_ready(y)

    # Pure-JAX reference (same math as the PyTorch module).
    output_scale = math.sqrt(2.0 / (1.0 + neg_slope ** 2))
    y_ref = output_scale * jax.nn.leaky_relu(x, negative_slope=neg_slope)

    assert y.shape == x.shape
    assert jnp.allclose(y, y_ref, atol=1e-6, rtol=1e-6)

    print("KERNEL_OK")
</pallas_src>

<mosaic_0001>
module attributes {stable_mosaic.version = 11 : i64} {
  func.func @_trelu_kernel(%arg0: i32, %arg1: memref<2x1024xf32, #tpu.memory_space<vmem>>, %arg2: memref<2x1024xf32, #tpu.memory_space<vmem>>) attributes {dimension_semantics = [#tpu.dimension_semantics<parallel>], iteration_bounds = array<i64: 1>, scalar_prefetch = 0 : i64, scratch_operands = 0 : i64, tpu.core_type = #tpu.core_type<tc>, window_params = [{transform_indices = @transform_0, window_bounds = array<i64: 2, 1024>}, {transform_indices = @transform_1, window_bounds = array<i64: 2, 1024>}]} {
    %c0 = arith.constant 0 : index
    %c0_0 = arith.constant 0 : index
    %0 = vector.load %arg1[%c0, %c0_0] : memref<2x1024xf32, #tpu.memory_space<vmem>>, vector<2x1024xf32>
    %cst = arith.constant 0.000000e+00 : f32
    %1 = vector.broadcast %cst : f32 to vector<2x1024xf32>
    %2 = arith.cmpf oge, %0, %1 : vector<2x1024xf32>
    %cst_1 = arith.constant 1.40719509 : f32
    %cst_2 = arith.constant 0.140719503 : f32
    %3 = vector.broadcast %cst_1 : f32 to vector<2x1024xf32>
    %4 = vector.broadcast %cst_2 : f32 to vector<2x1024xf32>
    %5 = arith.select %2, %3, %4 : vector<2x1024xi1>, vector<2x1024xf32>
    %6 = arith.mulf %0, %5 : vector<2x1024xf32>
    %c0_3 = arith.constant 0 : index
    %c0_4 = arith.constant 0 : index
    %7 = vector.load %arg2[%c0_3, %c0_4] : memref<2x1024xf32, #tpu.memory_space<vmem>>, vector<2x1024xf32>
    tpu.vector_store %arg2[%c0_3, %c0_4], %6 {strides = array<i32>} : memref<2x1024xf32, #tpu.memory_space<vmem>>, vector<2x1024xf32>,
    return
  }
  func.func @transform_0(%arg0: i32) -> (i32, i32) {
    %c0_i32 = arith.constant 0 : i32
    %c0_i32_0 = arith.constant 0 : i32
    return %arg0, %c0_i32 : i32, i32
  }
  func.func @transform_1(%arg0: i32) -> (i32, i32) {
    %c0_i32 = arith.constant 0 : i32
    %c0_i32_0 = arith.constant 0 : i32
    return %arg0, %c0_i32 : i32, i32
  }
}

</mosaic_0001>

<llo_original>
// kernel: tpu_custom_call.1
$region0: #{tpu_custom_call.1}
  #allocation0 [shape = 'u32[]', space=smem, size = 0x4, offset = 0x4, fixed_abs, tag = 'smem constant byte address 0x4 - core index']
  #allocation1 [shape = 'u32[72,128]{1,0:T(1,128)}', space=vmem, size = 0x9000, scoped, tag = 'internal scratch']
  %s0 = inlined_call_operand.hbm [shape: f32[2,1024], index: 0, kind: input, shape index: {}]
  %s1 = inlined_call_operand.hbm [shape: f32[2,1024], index: 1, kind: output, shape index: {}]
  %s2 = sld [smem:[#allocation0]]
  $region18: #{tpu_custom_call.1} parent=0
    _
  %s4 = ssub.s32 1, %s2
  %s5 = scalar_select 0, %s4, %s2
  $region1: #{tpu_custom_call.1} parent=0
    #allocation2 [shape = 'u8[8192]{0}', space=vmem, size = 0x2000, scoped, tag = 'input window, operand 0, single buffered']
    #allocation3 [shape = 's32[1]{0}', space=sflag, size = 0x4, scoped, tag = 'scoped memory for tpu_custom_call.1']
    #allocation4 [shape = 's32[1]{0}', space=sflag, size = 0x4, scoped, tag = 'scoped memory for tpu_custom_call.1']
    #allocation5 [shape = 'u8[8192]{0}', space=vmem, size = 0x2000, scoped, tag = 'output window, operand 0, single buffered']
    %6 = vsyncpa [#allocation3], 0
    %7 = vsyncpa [#allocation4], 0
    // Predicated region
    $region2: #{tpu_custom_call.1} parent=1 // pred_check
      _
    $region3: #{tpu_custom_call.1} parent=1 // pred_check_branch
      %9 = sbr.rel (0) target = $region5
    $region4: #{tpu_custom_call.1} parent=1 // pred_region
      %11 = vsyncadd [#allocation3], 0
      %s13 = sshll.u32 %s0, 4
      %s14 = int_to_ptr.hbm [resolvable:$true] %s13
      %s15 = sshll.u32 [#allocation2], 4
      %s16 = int_to_ptr.vmem [resolvable:$true] %s15
      %18 = dma.hbm_to_vmem [thread:$0]  %s14, 256, %s16, [#allocation3]
    $region5: #{tpu_custom_call.1} parent=1 // pred_fallthru
      _
    // Predicated region
    $region6: #{tpu_custom_call.1} parent=1 // pred_check
      _
    $region7: #{tpu_custom_call.1} parent=1 // pred_check_branch
      %20 = sbr.rel (0) target = $region9
    $region8: #{tpu_custom_call.1} parent=1 // pred_region
      %22 = dma.done [#allocation3], 256
    $region9: #{tpu_custom_call.1} parent=1 // pred_fallthru
      _
    %v23 = vld [vmem:[#allocation2] sm:$0xff]
    %v24 = vld [vmem:[#allocation2 + $0x8] sm:$0xff]
    %vm25 = vcmp.ge.f32.partialorder %v23, 0.0
    %vm26 = vcmp.ge.f32.partialorder %v24, 0.0
    %v27 = vsel %vm25, 1.4071951, 0.1407195
    %v28 = vsel %vm26, 1.4071951, 0.1407195
    %v29 = vmul.f32 %v23, %v27
    %v30 = vmul.f32 %v24, %v28
    %31 = vst [vmem:[#allocation5] sm:$0xff] %v29
    %32 = vst [vmem:[#allocation5 + $0x8] sm:$0xff] %v30
    // Predicated region
    $region10: #{tpu_custom_call.1} parent=1 // pred_check
      _
    $region11: #{tpu_custom_call.1} parent=1 // pred_check_branch
      %34 = sbr.rel (0) target = $region13
    $region12: #{tpu_custom_call.1} parent=1 // pred_region
      %36 = vsyncadd [#allocation4], 0
      %s38 = sshll.u32 [#allocation5], 4
      %s39 = int_to_ptr.vmem [resolvable:$true] %s38
      %s40 = sshll.u32 %s1, 4
      %s41 = int_to_ptr.hbm [resolvable:$true] %s40
      %43 = dma.vmem_to_hbm [thread:$0]  %s39, 256, %s41, [#allocation4]
    $region13: #{tpu_custom_call.1} parent=1 // pred_fallthru
      _
    // Predicated region
    $region14: #{tpu_custom_call.1} parent=1 // pred_check
      _
    $region15: #{tpu_custom_call.1} parent=1 // pred_check_branch
      %45 = sbr.rel (0) target = $region17
    $region16: #{tpu_custom_call.1} parent=1 // pred_region
      %47 = dma.done [#allocation4], 256
    $region17: #{tpu_custom_call.1} parent=1 // pred_fallthru
      _
    %48 = vsyncpa [#allocation3], 1
    %49 = vsyncpa [#allocation4], 1

</llo_original>
